<compile_context>
chip_gen: v6e
topology: v6e:2x2x1
jax: 0.10.0
libtpu: 0.0.40
codegen_flags: <defaults>
</compile_context>

<pallas_src>
import jax
import jax.numpy as jnp
from jax import lax
from jax.experimental import pallas as pl
from jax.experimental.pallas import tpu as pltpu

N_IN, N_HID, N_OUT = 6, 3, 7

# Packed, pre-scaled ("tanh-space") parameter vector layout.
_A1_OFF = 0                         # a1 = w1/2               : [0, 18)
_C1_OFF = _A1_OFF + N_IN * N_HID    # c1 = b1/2               : [18, 21)
_A2_OFF = _C1_OFF + N_HID           # a2 = w2/4               : [21, 42)
_C2_OFF = _A2_OFF + N_HID * N_OUT   # c2 = sum(w2)/4 + b2/2   : [42, 49)
_P_LEN = 64                         # padded length (SMEM f32[64] -> 256 B)

_LANE = 128   # vreg lane width
_SUB = 8      # vreg sublane height == in-kernel chunk size


def _round_up(n, m):
    return ((n + m - 1) // m) * m


def _mlp_kernel(p_ref, x_ref, o_ref):
    # p_ref: (64,) f32 in SMEM, packed [a1 | c1 | a2 | c2] (pre-scaled weights)
    # x_ref: (6, bs, 128) f32 VMEM  -- batch fills sublanes (bs) and lanes (128)
    # o_ref: (7, bs, 128) f32 VMEM
    bs = x_ref.shape[1]
    n_chunks = bs // _SUB

    def chunk(c, carry):
        off = pl.multiple_of(c * _SUB, _SUB)
        sl = pl.ds(off, _SUB)
        xs = [x_ref[k, sl, :] for k in range(N_IN)]        # 6 full (8,128) vregs
        # Hidden layer in tanh space: ht_j = tanh(sum_k a1[k,j]*x_k + c1_j)
        # (sigmoid(z) = 0.5*tanh(z/2)+0.5; the 0.5s are folded into a2/c2 below)
        ht = []
        for j in range(N_HID):
            acc = xs[0] * p_ref[_A1_OFF + j]
            for k in range(1, N_IN):
                acc = acc + xs[k] * p_ref[_A1_OFF + k * N_HID + j]
            ht.append(jnp.tanh(acc + p_ref[_C1_OFF + j]))
        # Output layer: y_i = 0.5*tanh(sum_j a2[j,i]*ht_j + c2_i) + 0.5
        for i in range(N_OUT):
            acc = ht[0] * p_ref[_A2_OFF + i]
            for j in range(1, N_HID):
                acc = acc + ht[j] * p_ref[_A2_OFF + j * N_OUT + i]
            o_ref[i, sl, :] = 0.5 * jnp.tanh(acc + p_ref[_C2_OFF + i]) + 0.5
        return carry

    # Rolled (partially unrolled) loop keeps h/ht vreg-resident for big tiles.
    lax.fori_loop(0, n_chunks, chunk, 0, unroll=min(4, n_chunks))


def pack_params(w1, b1, w2, b2):
    """Fold both sigmoids into single-tanh form and pack into one (64,) f32 vector.

    w1:(6,3)=W1.T  b1:(1,3)/(3,)  w2:(3,7)=W2.T  b2:(1,7)/(7,)
    """
    w1 = jnp.asarray(w1, jnp.float32).reshape(N_IN, N_HID)
    b1 = jnp.asarray(b1, jnp.float32).reshape(N_HID)
    w2 = jnp.asarray(w2, jnp.float32).reshape(N_HID, N_OUT)
    b2 = jnp.asarray(b2, jnp.float32).reshape(N_OUT)
    a1 = 0.5 * w1                                    # tanh argument = z1/2
    c1 = 0.5 * b1
    a2 = 0.25 * w2                                   # absorbs h = 0.5*tanh + 0.5
    c2 = 0.25 * jnp.sum(w2, axis=0) + 0.5 * b2       # tanh argument = z2/2
    p = jnp.zeros((_P_LEN,), jnp.float32)
    p = p.at[_A1_OFF:_A1_OFF + N_IN * N_HID].set(a1.reshape(-1))
    p = p.at[_C1_OFF:_C1_OFF + N_HID].set(c1)
    p = p.at[_A2_OFF:_A2_OFF + N_HID * N_OUT].set(a2.reshape(-1))
    p = p.at[_C2_OFF:_C2_OFF + N_OUT].set(c2)
    return p


def forward_slab(params, x_slab, *, block_sublanes):
    """Core kernel call. x_slab: (6, NB, 128) f32, NB % block_sublanes == 0."""
    n_in, nb, lane = x_slab.shape
    assert n_in == N_IN and lane == _LANE
    assert block_sublanes % _SUB == 0 and nb % block_sublanes == 0
    grid = (nb // block_sublanes,)
    return pl.pallas_call(
        _mlp_kernel,
        out_shape=jax.ShapeDtypeStruct((N_OUT, nb, _LANE), jnp.float32),
        grid=grid,
        in_specs=[
            pl.BlockSpec(memory_space=pltpu.MemorySpace.SMEM),      # packed params
            pl.BlockSpec((N_IN, block_sublanes, _LANE), lambda i: (0, i, 0)),
        ],
        out_specs=pl.BlockSpec((N_OUT, block_sublanes, _LANE), lambda i: (0, i, 0)),
        compiler_params=pltpu.CompilerParams(
            dimension_semantics=("parallel",),   # batch tiles: megacore-shardable
        ),
    )(params, x_slab)


def _choose_block_sublanes(nb, tile_sublanes):
    """Pick the sublane-block size (multiple of 8) for one grid step."""
    tile_sublanes = max(_SUB, _round_up(tile_sublanes, _SUB))
    nb8 = _round_up(max(nb, 1), _SUB)
    if nb8 <= _SUB:
        return _SUB
    if nb8 <= tile_sublanes:
        # Whole batch would fit in one tile: split into ~2 "parallel" steps so
        # v7x's two TensorCores both get work.
        return _round_up(-(-nb8 // 2), _SUB)
    return tile_sublanes


def issue47_forward(x, w1, b1, w2, b2, *, tile_sublanes=512):
    """x: (B, 6); w1: (6,3)=W1.T; b1: (1,3); w2: (3,7)=W2.T; b2: (1,7) -> (B, 7)."""
    B = x.shape[0]
    nb = -(-B // _LANE)                       # number of 128-lane batch groups
    bs = _choose_block_sublanes(nb, tile_sublanes)
    nb_pad = _round_up(nb, bs)
    bp = nb_pad * _LANE

    params = pack_params(w1, b1, w2, b2)

    # Feature-major batch slab (6, nb_pad, 128): batch fills sublanes AND lanes.
    # NOTE: this transpose+pad is one extra HBM pass over the activations;
    # callers that already hold feature-major data should call forward_slab().
    x_fm = jnp.zeros((N_IN, bp), jnp.float32).at[:, :B].set(
        jnp.asarray(x, jnp.float32).T)
    x_slab = x_fm.reshape(N_IN, nb_pad, _LANE)

    out_slab = forward_slab(params, x_slab, block_sublanes=bs)
    return out_slab.reshape(N_OUT, bp)[:, :B].T


def _ref_forward(x, w1, b1, w2, b2):
    h = jax.nn.sigmoid(x @ w1 + b1)
    return jax.nn.sigmoid(h @ w2 + b2)


if __name__ == "__main__":
    key = jax.random.PRNGKey(0)
    kx, k1, k2, k3, k4 = jax.random.split(key, 5)

    # PyTorch Linear weights (W1 (3,6), W2 (7,3)) are passed transposed as (in, out).
    w1 = jax.random.normal(k1, (6, 3), dtype=jnp.float32) * 0.4
    b1 = jax.random.normal(k2, (1, 3), dtype=jnp.float32) * 0.1
    w2 = jax.random.normal(k3, (3, 7), dtype=jnp.float32) * 0.4
    b2 = jax.random.normal(k4, (1, 7), dtype=jnp.float32) * 0.1

    # Small batch (typical use of the PyTorch module): single grid step.
    batch = 8
    x = jax.random.normal(kx, (batch, 6), dtype=jnp.float32)
    out = jax.block_until_ready(issue47_forward(x, w1, b1, w2, b2))
    ref = _ref_forward(x, w1, b1, w2, b2)
    assert out.shape == (batch, 7)
    assert jnp.allclose(out, ref, atol=1e-5, rtol=1e-5)

    # Larger batch: exercises 2 "parallel" grid steps, batch padding and the
    # partially-unrolled in-kernel chunk loop (trip count > unroll factor).
    batch2 = 12000
    x2 = jax.random.normal(kx, (batch2, 6), dtype=jnp.float32)
    out2 = jax.block_until_ready(issue47_forward(x2, w1, b1, w2, b2))
    ref2 = _ref_forward(x2, w1, b1, w2, b2)
    assert out2.shape == (batch2, 7)
    assert jnp.allclose(out2, ref2, atol=1e-5, rtol=1e-5)

    print("KERNEL_OK")
</pallas_src>

<mosaic_0001>
module attributes {stable_mosaic.version = 11 : i64} {
  func.func @_mlp_kernel(%arg0: i32, %arg1: memref<64xf32, #tpu.memory_space<smem>>, %arg2: memref<6x8x128xf32, #tpu.memory_space<vmem>>, %arg3: memref<7x8x128xf32, #tpu.memory_space<vmem>>) attributes {dimension_semantics = [#tpu.dimension_semantics<parallel>], iteration_bounds = array<i64: 1>, scalar_prefetch = 0 : i64, scratch_operands = 0 : i64, tpu.core_type = #tpu.core_type<tc>, window_params = [{transform_indices = @transform_0, window_bounds = array<i64: 64>}, {transform_indices = @transform_1, window_bounds = array<i64: 6, 8, 128>}, {transform_indices = @transform_2, window_bounds = array<i64: 7, 8, 128>}]} {
    %c0_i32 = arith.constant 0 : i32
    %c8_i32 = arith.constant 8 : i32
    %0 = arith.muli %c0_i32, %c8_i32 : i32
    %1 = tpu.assume_multiple %0, 8 : i32
    %c0 = arith.constant 0 : index
    %2 = arith.index_cast %1 : i32 to index
    %c0_0 = arith.constant 0 : index
    %3 = vector.load %arg2[%c0, %2, %c0_0] : memref<6x8x128xf32, #tpu.memory_space<vmem>>, vector<1x8x128xf32>
    %4 = vector.shape_cast %3 : vector<1x8x128xf32> to vector<8x128xf32>
    %c1 = arith.constant 1 : index
    %5 = arith.index_cast %1 : i32 to index
    %c0_1 = arith.constant 0 : index
    %6 = vector.load %arg2[%c1, %5, %c0_1] : memref<6x8x128xf32, #tpu.memory_space<vmem>>, vector<1x8x128xf32>
    %7 = vector.shape_cast %6 : vector<1x8x128xf32> to vector<8x128xf32>
    %c2 = arith.constant 2 : index
    %8 = arith.index_cast %1 : i32 to index
    %c0_2 = arith.constant 0 : index
    %9 = vector.load %arg2[%c2, %8, %c0_2] : memref<6x8x128xf32, #tpu.memory_space<vmem>>, vector<1x8x128xf32>
    %10 = vector.shape_cast %9 : vector<1x8x128xf32> to vector<8x128xf32>
    %c3 = arith.constant 3 : index
    %11 = arith.index_cast %1 : i32 to index
    %c0_3 = arith.constant 0 : index
    %12 = vector.load %arg2[%c3, %11, %c0_3] : memref<6x8x128xf32, #tpu.memory_space<vmem>>, vector<1x8x128xf32>
    %13 = vector.shape_cast %12 : vector<1x8x128xf32> to vector<8x128xf32>
    %c4 = arith.constant 4 : index
    %14 = arith.index_cast %1 : i32 to index
    %c0_4 = arith.constant 0 : index
    %15 = vector.load %arg2[%c4, %14, %c0_4] : memref<6x8x128xf32, #tpu.memory_space<vmem>>, vector<1x8x128xf32>
    %16 = vector.shape_cast %15 : vector<1x8x128xf32> to vector<8x128xf32>
    %c5 = arith.constant 5 : index
    %17 = arith.index_cast %1 : i32 to index
    %c0_5 = arith.constant 0 : index
    %18 = vector.load %arg2[%c5, %17, %c0_5] : memref<6x8x128xf32, #tpu.memory_space<vmem>>, vector<1x8x128xf32>
    %19 = vector.shape_cast %18 : vector<1x8x128xf32> to vector<8x128xf32>
    %c0_6 = arith.constant 0 : index
    %20 = memref.load %arg1[%c0_6] : memref<64xf32, #tpu.memory_space<smem>>
    %21 = vector.broadcast %20 : f32 to vector<8x128xf32>
    %22 = arith.mulf %4, %21 : vector<8x128xf32>
    %c3_7 = arith.constant 3 : index
    %23 = memref.load %arg1[%c3_7] : memref<64xf32, #tpu.memory_space<smem>>
    %24 = vector.broadcast %23 : f32 to vector<8x128xf32>
    %25 = arith.mulf %7, %24 : vector<8x128xf32>
    %26 = arith.addf %22, %25 : vector<8x128xf32>
    %c6 = arith.constant 6 : index
    %27 = memref.load %arg1[%c6] : memref<64xf32, #tpu.memory_space<smem>>
    %28 = vector.broadcast %27 : f32 to vector<8x128xf32>
    %29 = arith.mulf %10, %28 : vector<8x128xf32>
    %30 = arith.addf %26, %29 : vector<8x128xf32>
    %c9 = arith.constant 9 : index
    %31 = memref.load %arg1[%c9] : memref<64xf32, #tpu.memory_space<smem>>
    %32 = vector.broadcast %31 : f32 to vector<8x128xf32>
    %33 = arith.mulf %13, %32 : vector<8x128xf32>
    %34 = arith.addf %30, %33 : vector<8x128xf32>
    %c12 = arith.constant 12 : index
    %35 = memref.load %arg1[%c12] : memref<64xf32, #tpu.memory_space<smem>>
    %36 = vector.broadcast %35 : f32 to vector<8x128xf32>
    %37 = arith.mulf %16, %36 : vector<8x128xf32>
    %38 = arith.addf %34, %37 : vector<8x128xf32>
    %c15 = arith.constant 15 : index
    %39 = memref.load %arg1[%c15] : memref<64xf32, #tpu.memory_space<smem>>
    %40 = vector.broadcast %39 : f32 to vector<8x128xf32>
    %41 = arith.mulf %19, %40 : vector<8x128xf32>
    %42 = arith.addf %38, %41 : vector<8x128xf32>
    %c18 = arith.constant 18 : index
    %43 = memref.load %arg1[%c18] : memref<64xf32, #tpu.memory_space<smem>>
    %44 = vector.broadcast %43 : f32 to vector<8x128xf32>
    %45 = arith.addf %42, %44 : vector<8x128xf32>
    %46 = math.tanh %45 : vector<8x128xf32>
    %c1_8 = arith.constant 1 : index
    %47 = memref.load %arg1[%c1_8] : memref<64xf32, #tpu.memory_space<smem>>
    %48 = vector.broadcast %47 : f32 to vector<8x128xf32>
    %49 = arith.mulf %4, %48 : vector<8x128xf32>
    %c4_9 = arith.constant 4 : index
    %50 = memref.load %arg1[%c4_9] : memref<64xf32, #tpu.memory_space<smem>>
    %51 = vector.broadcast %50 : f32 to vector<8x128xf32>
    %52 = arith.mulf %7, %51 : vector<8x128xf32>
    %53 = arith.addf %49, %52 : vector<8x128xf32>
    %c7 = arith.constant 7 : index
    %54 = memref.load %arg1[%c7] : memref<64xf32, #tpu.memory_space<smem>>
    %55 = vector.broadcast %54 : f32 to vector<8x128xf32>
    %56 = arith.mulf %10, %55 : vector<8x128xf32>
    %57 = arith.addf %53, %56 : vector<8x128xf32>
    %c10 = arith.constant 10 : index
    %58 = memref.load %arg1[%c10] : memref<64xf32, #tpu.memory_space<smem>>
    %59 = vector.broadcast %58 : f32 to vector<8x128xf32>
    %60 = arith.mulf %13, %59 : vector<8x128xf32>
    %61 = arith.addf %57, %60 : vector<8x128xf32>
    %c13 = arith.constant 13 : index
    %62 = memref.load %arg1[%c13] : memref<64xf32, #tpu.memory_space<smem>>
    %63 = vector.broadcast %62 : f32 to vector<8x128xf32>
    %64 = arith.mulf %16, %63 : vector<8x128xf32>
    %65 = arith.addf %61, %64 : vector<8x128xf32>
    %c16 = arith.constant 16 : index
    %66 = memref.load %arg1[%c16] : memref<64xf32, #tpu.memory_space<smem>>
    %67 = vector.broadcast %66 : f32 to vector<8x128xf32>
    %68 = arith.mulf %19, %67 : vector<8x128xf32>
    %69 = arith.addf %65, %68 : vector<8x128xf32>
    %c19 = arith.constant 19 : index
    %70 = memref.load %arg1[%c19] : memref<64xf32, #tpu.memory_space<smem>>
    %71 = vector.broadcast %70 : f32 to vector<8x128xf32>
    %72 = arith.addf %69, %71 : vector<8x128xf32>
    %73 = math.tanh %72 : vector<8x128xf32>
    %c2_10 = arith.constant 2 : index
    %74 = memref.load %arg1[%c2_10] : memref<64xf32, #tpu.memory_space<smem>>
    %75 = vector.broadcast %74 : f32 to vector<8x128xf32>
    %76 = arith.mulf %4, %75 : vector<8x128xf32>
    %c5_11 = arith.constant 5 : index
    %77 = memref.load %arg1[%c5_11] : memref<64xf32, #tpu.memory_space<smem>>
    %78 = vector.broadcast %77 : f32 to vector<8x128xf32>
    %79 = arith.mulf %7, %78 : vector<8x128xf32>
    %80 = arith.addf %76, %79 : vector<8x128xf32>
    %c8 = arith.constant 8 : index
    %81 = memref.load %arg1[%c8] : memref<64xf32, #tpu.memory_space<smem>>
    %82 = vector.broadcast %81 : f32 to vector<8x128xf32>
    %83 = arith.mulf %10, %82 : vector<8x128xf32>
    %84 = arith.addf %80, %83 : vector<8x128xf32>
    %c11 = arith.constant 11 : index
    %85 = memref.load %arg1[%c11] : memref<64xf32, #tpu.memory_space<smem>>
    %86 = vector.broadcast %85 : f32 to vector<8x128xf32>
    %87 = arith.mulf %13, %86 : vector<8x128xf32>
    %88 = arith.addf %84, %87 : vector<8x128xf32>
    %c14 = arith.constant 14 : index
    %89 = memref.load %arg1[%c14] : memref<64xf32, #tpu.memory_space<smem>>
    %90 = vector.broadcast %89 : f32 to vector<8x128xf32>
    %91 = arith.mulf %16, %90 : vector<8x128xf32>
    %92 = arith.addf %88, %91 : vector<8x128xf32>
    %c17 = arith.constant 17 : index
    %93 = memref.load %arg1[%c17] : memref<64xf32, #tpu.memory_space<smem>>
    %94 = vector.broadcast %93 : f32 to vector<8x128xf32>
    %95 = arith.mulf %19, %94 : vector<8x128xf32>
    %96 = arith.addf %92, %95 : vector<8x128xf32>
    %c20 = arith.constant 20 : index
    %97 = memref.load %arg1[%c20] : memref<64xf32, #tpu.memory_space<smem>>
    %98 = vector.broadcast %97 : f32 to vector<8x128xf32>
    %99 = arith.addf %96, %98 : vector<8x128xf32>
    %100 = math.tanh %99 : vector<8x128xf32>
    %c21 = arith.constant 21 : index
    %101 = memref.load %arg1[%c21] : memref<64xf32, #tpu.memory_space<smem>>
    %102 = vector.broadcast %101 : f32 to vector<8x128xf32>
    %103 = arith.mulf %46, %102 : vector<8x128xf32>
    %c28 = arith.constant 28 : index
    %104 = memref.load %arg1[%c28] : memref<64xf32, #tpu.memory_space<smem>>
    %105 = vector.broadcast %104 : f32 to vector<8x128xf32>
    %106 = arith.mulf %73, %105 : vector<8x128xf32>
    %107 = arith.addf %103, %106 : vector<8x128xf32>
    %c35 = arith.constant 35 : index
    %108 = memref.load %arg1[%c35] : memref<64xf32, #tpu.memory_space<smem>>
    %109 = vector.broadcast %108 : f32 to vector<8x128xf32>
    %110 = arith.mulf %100, %109 : vector<8x128xf32>
    %111 = arith.addf %107, %110 : vector<8x128xf32>
    %c42 = arith.constant 42 : index
    %112 = memref.load %arg1[%c42] : memref<64xf32, #tpu.memory_space<smem>>
    %113 = vector.broadcast %112 : f32 to vector<8x128xf32>
    %114 = arith.addf %111, %113 : vector<8x128xf32>
    %115 = math.tanh %114 : vector<8x128xf32>
    %cst = arith.constant 5.000000e-01 : f32
    %116 = vector.broadcast %cst : f32 to vector<8x128xf32>
    %117 = arith.mulf %116, %115 : vector<8x128xf32>
    %cst_12 = arith.constant 5.000000e-01 : f32
    %118 = vector.broadcast %cst_12 : f32 to vector<8x128xf32>
    %119 = arith.addf %117, %118 : vector<8x128xf32>
    %c0_13 = arith.constant 0 : index
    %120 = arith.index_cast %1 : i32 to index
    %c0_14 = arith.constant 0 : index
    %121 = vector.load %arg3[%c0_13, %120, %c0_14] : memref<7x8x128xf32, #tpu.memory_space<vmem>>, vector<1x8x128xf32>
    %122 = vector.shape_cast %121 : vector<1x8x128xf32> to vector<8x128xf32>
    %123 = vector.shape_cast %119 : vector<8x128xf32> to vector<1x8x128xf32>
    tpu.vector_store %arg3[%c0_13, %120, %c0_14], %123 {strides = array<i32>} : memref<7x8x128xf32, #tpu.memory_space<vmem>>, vector<1x8x128xf32>,
    %c22 = arith.constant 22 : index
    %124 = memref.load %arg1[%c22] : memref<64xf32, #tpu.memory_space<smem>>
    %125 = vector.broadcast %124 : f32 to vector<8x128xf32>
    %126 = arith.mulf %46, %125 : vector<8x128xf32>
    %c29 = arith.constant 29 : index
    %127 = memref.load %arg1[%c29] : memref<64xf32, #tpu.memory_space<smem>>
    %128 = vector.broadcast %127 : f32 to vector<8x128xf32>
    %129 = arith.mulf %73, %128 : vector<8x128xf32>
    %130 = arith.addf %126, %129 : vector<8x128xf32>
    %c36 = arith.constant 36 : index
    %131 = memref.load %arg1[%c36] : memref<64xf32, #tpu.memory_space<smem>>
    %132 = vector.broadcast %131 : f32 to vector<8x128xf32>
    %133 = arith.mulf %100, %132 : vector<8x128xf32>
    %134 = arith.addf %130, %133 : vector<8x128xf32>
    %c43 = arith.constant 43 : index
    %135 = memref.load %arg1[%c43] : memref<64xf32, #tpu.memory_space<smem>>
    %136 = vector.broadcast %135 : f32 to vector<8x128xf32>
    %137 = arith.addf %134, %136 : vector<8x128xf32>
    %138 = math.tanh %137 : vector<8x128xf32>
    %cst_15 = arith.constant 5.000000e-01 : f32
    %139 = vector.broadcast %cst_15 : f32 to vector<8x128xf32>
    %140 = arith.mulf %139, %138 : vector<8x128xf32>
    %cst_16 = arith.constant 5.000000e-01 : f32
    %141 = vector.broadcast %cst_16 : f32 to vector<8x128xf32>
    %142 = arith.addf %140, %141 : vector<8x128xf32>
    %c1_17 = arith.constant 1 : index
    %143 = arith.index_cast %1 : i32 to index
    %c0_18 = arith.constant 0 : index
    %144 = vector.load %arg3[%c1_17, %143, %c0_18] : memref<7x8x128xf32, #tpu.memory_space<vmem>>, vector<1x8x128xf32>
    %145 = vector.shape_cast %144 : vector<1x8x128xf32> to vector<8x128xf32>
    %146 = vector.shape_cast %142 : vector<8x128xf32> to vector<1x8x128xf32>
    tpu.vector_store %arg3[%c1_17, %143, %c0_18], %146 {strides = array<i32>} : memref<7x8x128xf32, #tpu.memory_space<vmem>>, vector<1x8x128xf32>,
    %c23 = arith.constant 23 : index
    %147 = memref.load %arg1[%c23] : memref<64xf32, #tpu.memory_space<smem>>
    %148 = vector.broadcast %147 : f32 to vector<8x128xf32>
    %149 = arith.mulf %46, %148 : vector<8x128xf32>
    %c30 = arith.constant 30 : index
    %150 = memref.load %arg1[%c30] : memref<64xf32, #tpu.memory_space<smem>>
    %151 = vector.broadcast %150 : f32 to vector<8x128xf32>
    %152 = arith.mulf %73, %151 : vector<8x128xf32>
    %153 = arith.addf %149, %152 : vector<8x128xf32>
    %c37 = arith.constant 37 : index
    %154 = memref.load %arg1[%c37] : memref<64xf32, #tpu.memory_space<smem>>
    %155 = vector.broadcast %154 : f32 to vector<8x128xf32>
    %156 = arith.mulf %100, %155 : vector<8x128xf32>
    %157 = arith.addf %153, %156 : vector<8x128xf32>
    %c44 = arith.constant 44 : index
    %158 = memref.load %arg1[%c44] : memref<64xf32, #tpu.memory_space<smem>>
    %159 = vector.broadcast %158 : f32 to vector<8x128xf32>
    %160 = arith.addf %157, %159 : vector<8x128xf32>
    %161 = math.tanh %160 : vector<8x128xf32>
    %cst_19 = arith.constant 5.000000e-01 : f32
    %162 = vector.broadcast %cst_19 : f32 to vector<8x128xf32>
    %163 = arith.mulf %162, %161 : vector<8x128xf32>
    %cst_20 = arith.constant 5.000000e-01 : f32
    %164 = vector.broadcast %cst_20 : f32 to vector<8x128xf32>
    %165 = arith.addf %163, %164 : vector<8x128xf32>
    %c2_21 = arith.constant 2 : index
    %166 = arith.index_cast %1 : i32 to index
    %c0_22 = arith.constant 0 : index
    %167 = vector.load %arg3[%c2_21, %166, %c0_22] : memref<7x8x128xf32, #tpu.memory_space<vmem>>, vector<1x8x128xf32>
    %168 = vector.shape_cast %167 : vector<1x8x128xf32> to vector<8x128xf32>
    %169 = vector.shape_cast %165 : vector<8x128xf32> to vector<1x8x128xf32>
    tpu.vector_store %arg3[%c2_21, %166, %c0_22], %169 {strides = array<i32>} : memref<7x8x128xf32, #tpu.memory_space<vmem>>, vector<1x8x128xf32>,
    %c24 = arith.constant 24 : index
    %170 = memref.load %arg1[%c24] : memref<64xf32, #tpu.memory_space<smem>>
    %171 = vector.broadcast %170 : f32 to vector<8x128xf32>
    %172 = arith.mulf %46, %171 : vector<8x128xf32>
    %c31 = arith.constant 31 : index
    %173 = memref.load %arg1[%c31] : memref<64xf32, #tpu.memory_space<smem>>
    %174 = vector.broadcast %173 : f32 to vector<8x128xf32>
    %175 = arith.mulf %73, %174 : vector<8x128xf32>
    %176 = arith.addf %172, %175 : vector<8x128xf32>
    %c38 = arith.constant 38 : index
    %177 = memref.load %arg1[%c38] : memref<64xf32, #tpu.memory_space<smem>>
    %178 = vector.broadcast %177 : f32 to vector<8x128xf32>
    %179 = arith.mulf %100, %178 : vector<8x128xf32>
    %180 = arith.addf %176, %179 : vector<8x128xf32>
    %c45 = arith.constant 45 : index
    %181 = memref.load %arg1[%c45] : memref<64xf32, #tpu.memory_space<smem>>
    %182 = vector.broadcast %181 : f32 to vector<8x128xf32>
    %183 = arith.addf %180, %182 : vector<8x128xf32>
    %184 = math.tanh %183 : vector<8x128xf32>
    %cst_23 = arith.constant 5.000000e-01 : f32
    %185 = vector.broadcast %cst_23 : f32 to vector<8x128xf32>
    %186 = arith.mulf %185, %184 : vector<8x128xf32>
    %cst_24 = arith.constant 5.000000e-01 : f32
    %187 = vector.broadcast %cst_24 : f32 to vector<8x128xf32>
    %188 = arith.addf %186, %187 : vector<8x128xf32>
    %c3_25 = arith.constant 3 : index
    %189 = arith.index_cast %1 : i32 to index
    %c0_26 = arith.constant 0 : index
    %190 = vector.load %arg3[%c3_25, %189, %c0_26] : memref<7x8x128xf32, #tpu.memory_space<vmem>>, vector<1x8x128xf32>
    %191 = vector.shape_cast %190 : vector<1x8x128xf32> to vector<8x128xf32>
    %192 = vector.shape_cast %188 : vector<8x128xf32> to vector<1x8x128xf32>
    tpu.vector_store %arg3[%c3_25, %189, %c0_26], %192 {strides = array<i32>} : memref<7x8x128xf32, #tpu.memory_space<vmem>>, vector<1x8x128xf32>,
    %c25 = arith.constant 25 : index
    %193 = memref.load %arg1[%c25] : memref<64xf32, #tpu.memory_space<smem>>
    %194 = vector.broadcast %193 : f32 to vector<8x128xf32>
    %195 = arith.mulf %46, %194 : vector<8x128xf32>
    %c32 = arith.constant 32 : index
    %196 = memref.load %arg1[%c32] : memref<64xf32, #tpu.memory_space<smem>>
    %197 = vector.broadcast %196 : f32 to vector<8x128xf32>
    %198 = arith.mulf %73, %197 : vector<8x128xf32>
    %199 = arith.addf %195, %198 : vector<8x128xf32>
    %c39 = arith.constant 39 : index
    %200 = memref.load %arg1[%c39] : memref<64xf32, #tpu.memory_space<smem>>
    %201 = vector.broadcast %200 : f32 to vector<8x128xf32>
    %202 = arith.mulf %100, %201 : vector<8x128xf32>
    %203 = arith.addf %199, %202 : vector<8x128xf32>
    %c46 = arith.constant 46 : index
    %204 = memref.load %arg1[%c46] : memref<64xf32, #tpu.memory_space<smem>>
    %205 = vector.broadcast %204 : f32 to vector<8x128xf32>
    %206 = arith.addf %203, %205 : vector<8x128xf32>
    %207 = math.tanh %206 : vector<8x128xf32>
    %cst_27 = arith.constant 5.000000e-01 : f32
    %208 = vector.broadcast %cst_27 : f32 to vector<8x128xf32>
    %209 = arith.mulf %208, %207 : vector<8x128xf32>
    %cst_28 = arith.constant 5.000000e-01 : f32
    %210 = vector.broadcast %cst_28 : f32 to vector<8x128xf32>
    %211 = arith.addf %209, %210 : vector<8x128xf32>
    %c4_29 = arith.constant 4 : index
    %212 = arith.index_cast %1 : i32 to index
    %c0_30 = arith.constant 0 : index
    %213 = vector.load %arg3[%c4_29, %212, %c0_30] : memref<7x8x128xf32, #tpu.memory_space<vmem>>, vector<1x8x128xf32>
    %214 = vector.shape_cast %213 : vector<1x8x128xf32> to vector<8x128xf32>
    %215 = vector.shape_cast %211 : vector<8x128xf32> to vector<1x8x128xf32>
    tpu.vector_store %arg3[%c4_29, %212, %c0_30], %215 {strides = array<i32>} : memref<7x8x128xf32, #tpu.memory_space<vmem>>, vector<1x8x128xf32>,
    %c26 = arith.constant 26 : index
    %216 = memref.load %arg1[%c26] : memref<64xf32, #tpu.memory_space<smem>>
    %217 = vector.broadcast %216 : f32 to vector<8x128xf32>
    %218 = arith.mulf %46, %217 : vector<8x128xf32>
    %c33 = arith.constant 33 : index
    %219 = memref.load %arg1[%c33] : memref<64xf32, #tpu.memory_space<smem>>
    %220 = vector.broadcast %219 : f32 to vector<8x128xf32>
    %221 = arith.mulf %73, %220 : vector<8x128xf32>
    %222 = arith.addf %218, %221 : vector<8x128xf32>
    %c40 = arith.constant 40 : index
    %223 = memref.load %arg1[%c40] : memref<64xf32, #tpu.memory_space<smem>>
    %224 = vector.broadcast %223 : f32 to vector<8x128xf32>
    %225 = arith.mulf %100, %224 : vector<8x128xf32>
    %226 = arith.addf %222, %225 : vector<8x128xf32>
    %c47 = arith.constant 47 : index
    %227 = memref.load %arg1[%c47] : memref<64xf32, #tpu.memory_space<smem>>
    %228 = vector.broadcast %227 : f32 to vector<8x128xf32>
    %229 = arith.addf %226, %228 : vector<8x128xf32>
    %230 = math.tanh %229 : vector<8x128xf32>
    %cst_31 = arith.constant 5.000000e-01 : f32
    %231 = vector.broadcast %cst_31 : f32 to vector<8x128xf32>
    %232 = arith.mulf %231, %230 : vector<8x128xf32>
    %cst_32 = arith.constant 5.000000e-01 : f32
    %233 = vector.broadcast %cst_32 : f32 to vector<8x128xf32>
    %234 = arith.addf %232, %233 : vector<8x128xf32>
    %c5_33 = arith.constant 5 : index
    %235 = arith.index_cast %1 : i32 to index
    %c0_34 = arith.constant 0 : index
    %236 = vector.load %arg3[%c5_33, %235, %c0_34] : memref<7x8x128xf32, #tpu.memory_space<vmem>>, vector<1x8x128xf32>
    %237 = vector.shape_cast %236 : vector<1x8x128xf32> to vector<8x128xf32>
    %238 = vector.shape_cast %234 : vector<8x128xf32> to vector<1x8x128xf32>
    tpu.vector_store %arg3[%c5_33, %235, %c0_34], %238 {strides = array<i32>} : memref<7x8x128xf32, #tpu.memory_space<vmem>>, vector<1x8x128xf32>,
    %c27 = arith.constant 27 : index
    %239 = memref.load %arg1[%c27] : memref<64xf32, #tpu.memory_space<smem>>
    %240 = vector.broadcast %239 : f32 to vector<8x128xf32>
    %241 = arith.mulf %46, %240 : vector<8x128xf32>
    %c34 = arith.constant 34 : index
    %242 = memref.load %arg1[%c34] : memref<64xf32, #tpu.memory_space<smem>>
    %243 = vector.broadcast %242 : f32 to vector<8x128xf32>
    %244 = arith.mulf %73, %243 : vector<8x128xf32>
    %245 = arith.addf %241, %244 : vector<8x128xf32>
    %c41 = arith.constant 41 : index
    %246 = memref.load %arg1[%c41] : memref<64xf32, #tpu.memory_space<smem>>
    %247 = vector.broadcast %246 : f32 to vector<8x128xf32>
    %248 = arith.mulf %100, %247 : vector<8x128xf32>
    %249 = arith.addf %245, %248 : vector<8x128xf32>
    %c48 = arith.constant 48 : index
    %250 = memref.load %arg1[%c48] : memref<64xf32, #tpu.memory_space<smem>>
    %251 = vector.broadcast %250 : f32 to vector<8x128xf32>
    %252 = arith.addf %249, %251 : vector<8x128xf32>
    %253 = math.tanh %252 : vector<8x128xf32>
    %cst_35 = arith.constant 5.000000e-01 : f32
    %254 = vector.broadcast %cst_35 : f32 to vector<8x128xf32>
    %255 = arith.mulf %254, %253 : vector<8x128xf32>
    %cst_36 = arith.constant 5.000000e-01 : f32
    %256 = vector.broadcast %cst_36 : f32 to vector<8x128xf32>
    %257 = arith.addf %255, %256 : vector<8x128xf32>
    %c6_37 = arith.constant 6 : index
    %258 = arith.index_cast %1 : i32 to index
    %c0_38 = arith.constant 0 : index
    %259 = vector.load %arg3[%c6_37, %258, %c0_38] : memref<7x8x128xf32, #tpu.memory_space<vmem>>, vector<1x8x128xf32>
    %260 = vector.shape_cast %259 : vector<1x8x128xf32> to vector<8x128xf32>
    %261 = vector.shape_cast %257 : vector<8x128xf32> to vector<1x8x128xf32>
    tpu.vector_store %arg3[%c6_37, %258, %c0_38], %261 {strides = array<i32>} : memref<7x8x128xf32, #tpu.memory_space<vmem>>, vector<1x8x128xf32>,
    %c1_i32 = arith.constant 1 : i32
    return
  }
  func.func @transform_0(%arg0: i32) -> i32 {
    %c0_i32 = arith.constant 0 : i32
    %c0_i32_0 = arith.constant 0 : i32
    return %c0_i32 : i32
  }
  func.func @transform_1(%arg0: i32) -> (i32, i32, i32) {
    %c0_i32 = arith.constant 0 : i32
    %c0_i32_0 = arith.constant 0 : i32
    %c0_i32_1 = arith.constant 0 : i32
    return %c0_i32, %arg0, %c0_i32_0 : i32, i32, i32
  }
  func.func @transform_2(%arg0: i32) -> (i32, i32, i32) {
    %c0_i32 = arith.constant 0 : i32
    %c0_i32_0 = arith.constant 0 : i32
    %c0_i32_1 = arith.constant 0 : i32
    return %c0_i32, %arg0, %c0_i32_0 : i32, i32, i32
  }
}

</mosaic_0001>

<llo_original>
// kernel: tpu_custom_call.1
$region0: #{tpu_custom_call.1}
  #allocation0 [shape = 'u32[]', space=smem, size = 0x4, offset = 0x4, fixed_abs, tag = 'smem constant byte address 0x4 - core index']
  #allocation1 [shape = 'u32[144,128]{1,0:T(1,128)}', space=vmem, size = 0x12000, scoped, tag = 'internal scratch']
  %s0 = inlined_call_operand.hbm [shape: f32[64], index: 0, kind: input, shape index: {}]
  %s1 = inlined_call_operand.hbm [shape: f32[6,8,128], index: 1, kind: input, shape index: {}]
  %s2 = inlined_call_operand.hbm [shape: f32[7,8,128], index: 2, kind: output, shape index: {}]
  %s3 = sld [smem:[#allocation0]]
  $region26: #{tpu_custom_call.1} parent=0
    _
  %s5 = ssub.s32 1, %s3
  %s6 = scalar_select 0, %s5, %s3
  $region1: #{tpu_custom_call.1} parent=0
    #allocation2 [shape = 'u8[512]{0}', space=smem, size = 0x200, scoped, tag = 'input window, operand 0, single buffered']
    #allocation3 [shape = 's32[1]{0}', space=sflag, size = 0x4, scoped, tag = 'scoped memory for tpu_custom_call.1']
    #allocation4 [shape = 's32[1]{0}', space=sflag, size = 0x4, scoped, tag = 'scoped memory for tpu_custom_call.1']
    #allocation5 [shape = 's32[1]{0}', space=sflag, size = 0x4, scoped, tag = 'scoped memory for tpu_custom_call.1']
    #allocation6 [shape = 'u8[24576]{0}', space=vmem, size = 0x6000, scoped, tag = 'input window, operand 1, single buffered']
    #allocation7 [shape = 'u8[28672]{0}', space=vmem, size = 0x7000, scoped, tag = 'output window, operand 0, single buffered']
    %7 = vsyncpa [#allocation5], 0
    %8 = vsyncpa [#allocation3], 0
    %9 = vsyncpa [#allocation4], 0
    // Predicated region
    $region2: #{tpu_custom_call.1} parent=1 // pred_check
      _
    $region3: #{tpu_custom_call.1} parent=1 // pred_check_branch
      %11 = sbr.rel (0) target = $region5
    $region4: #{tpu_custom_call.1} parent=1 // pred_region
      %s13 = ssub.s32 16, 16
      %14 = vsyncadd [#allocation5], %s13
      %17 = dma.hbm_to_smem %s0, 16, [#allocation2], [#allocation5]
    $region5: #{tpu_custom_call.1} parent=1 // pred_fallthru
      _
    // Predicated region
    $region6: #{tpu_custom_call.1} parent=1 // pred_check
      _
    $region7: #{tpu_custom_call.1} parent=1 // pred_check_branch
      %19 = sbr.rel (0) target = $region9
    $region8: #{tpu_custom_call.1} parent=1 // pred_region
      %s21 = ssub.s32 768, 768
      %22 = vsyncadd [#allocation3], %s21
      %s23 = sshll.u32 [#allocation6], 4
      %s24 = int_to_ptr.vmem [resolvable:$true] %s23
      %29 = dma.hbm_to_vmem [thread:$0]  %s1, 768, %s24, [#allocation3], 128, 128, 8
    $region9: #{tpu_custom_call.1} parent=1 // pred_fallthru
      _
    // Predicated region
    $region10: #{tpu_custom_call.1} parent=1 // pred_check
      _
    $region11: #{tpu_custom_call.1} parent=1 // pred_check_branch
      %31 = sbr.rel (0) target = $region13
    $region12: #{tpu_custom_call.1} parent=1 // pred_region
      %32 = dma.done [#allocation5], 16
    $region13: #{tpu_custom_call.1} parent=1 // pred_fallthru
      _
    // Predicated region
    $region14: #{tpu_custom_call.1} parent=1 // pred_check
      _
    $region15: #{tpu_custom_call.1} parent=1 // pred_check_branch
      %34 = sbr.rel (0) target = $region17
    $region16: #{tpu_custom_call.1} parent=1 // pred_region
      %35 = dma.done [#allocation3], 768
    $region17: #{tpu_custom_call.1} parent=1 // pred_fallthru
      _
    %36 = sfence
    %v37 = vld [vmem:[#allocation6] sm:$0xff]
    %s38 = sadd.s32 0, 8
    %s39 = scalar_lea.vmem [#allocation6], %s38
    %v40 = vld [vmem:[%s39] sm:$0xff]
    %s41 = sadd.s32 0, 16
    %s42 = scalar_lea.vmem [#allocation6], %s41
    %v43 = vld [vmem:[%s42] sm:$0xff]
    %s44 = sadd.s32 0, 24
    %s45 = scalar_lea.vmem [#allocation6], %s44
    %v46 = vld [vmem:[%s45] sm:$0xff]
    %s47 = sadd.s32 0, 32
    %s48 = scalar_lea.vmem [#allocation6], %s47
    %v49 = vld [vmem:[%s48] sm:$0xff]
    %s50 = sadd.s32 0, 40
    %s51 = scalar_lea.vmem [#allocation6], %s50
    %v52 = vld [vmem:[%s51] sm:$0xff]
    %s53 = sld [smem:[#allocation2]]
    %v54 = vstv %s53
    %v55 = vmul.f32 %v37, %v54
    %s56 = sld [smem:[#allocation2 + $0x3]]
    %v57 = vstv %s56
    %v58 = vmul.f32 %v40, %v57
    %v59 = vadd.f32 %v55, %v58
    %s60 = sld [smem:[#allocation2 + $0x6]]
    %v61 = vstv %s60
    %v62 = vmul.f32 %v43, %v61
    %v63 = vadd.f32 %v59, %v62
    %s64 = sld [smem:[#allocation2 + $0x9]]
    %v65 = vstv %s64
    %v66 = vmul.f32 %v46, %v65
    %v67 = vadd.f32 %v63, %v66
    %s68 = sld [smem:[#allocation2 + $0xc]]
    %v69 = vstv %s68
    %v70 = vmul.f32 %v49, %v69
    %v71 = vadd.f32 %v67, %v70
    %s72 = sld [smem:[#allocation2 + $0xf]]
    %v73 = vstv %s72
    %v74 = vmul.f32 %v52, %v73
    %v75 = vadd.f32 %v71, %v74
    %s76 = sld [smem:[#allocation2 + $0x12]]
    %v77 = vstv %s76
    %v78 = vadd.f32 %v75, %v77
    %v79 = vtanh.pop %v78
    %s80 = sld [smem:[#allocation2 + $0x1]]
    %v81 = vstv %s80
    %v82 = vmul.f32 %v37, %v81
    %s83 = sld [smem:[#allocation2 + $0x4]]
    %v84 = vstv %s83
    %v85 = vmul.f32 %v40, %v84
    %v86 = vadd.f32 %v82, %v85
    %s87 = sld [smem:[#allocation2 + $0x7]]
    %v88 = vstv %s87
    %v89 = vmul.f32 %v43, %v88
    %v90 = vadd.f32 %v86, %v89
    %s91 = sld [smem:[#allocation2 + $0xa]]
    %v92 = vstv %s91
    %v93 = vmul.f32 %v46, %v92
    %v94 = vadd.f32 %v90, %v93
    %s95 = sld [smem:[#allocation2 + $0xd]]
    %v96 = vstv %s95
    %v97 = vmul.f32 %v49, %v96
    %v98 = vadd.f32 %v94, %v97
    %s99 = sld [smem:[#allocation2 + $0x10]]
    %v100 = vstv %s99
    %v101 = vmul.f32 %v52, %v100
    %v102 = vadd.f32 %v98, %v101
    %s103 = sld [smem:[#allocation2 + $0x13]]
    %v104 = vstv %s103
    %v105 = vadd.f32 %v102, %v104
    %v106 = vtanh.pop %v105
    %s107 = sld [smem:[#allocation2 + $0x2]]
    %v108 = vstv %s107
    %v109 = vmul.f32 %v37, %v108
    %s110 = sld [smem:[#allocation2 + $0x5]]
    %v111 = vstv %s110
    %v112 = vmul.f32 %v40, %v111
    %v113 = vadd.f32 %v109, %v112
    %s114 = sld [smem:[#allocation2 + $0x8]]
    %v115 = vstv %s114
    %v116 = vmul.f32 %v43, %v115
    %v117 = vadd.f32 %v113, %v116
    %s118 = sld [smem:[#allocation2 + $0xb]]
    %v119 = vstv %s118
    %v120 = vmul.f32 %v46, %v119
    %v121 = vadd.f32 %v117, %v120
    %s122 = sld [smem:[#allocation2 + $0xe]]
    %v123 = vstv %s122
    %v124 = vmul.f32 %v49, %v123
    %v125 = vadd.f32 %v121, %v124
    %s126 = sld [smem:[#allocation2 + $0x11]]
    %v127 = vstv %s126
    %v128 = vmul.f32 %v52, %v127
    %v129 = vadd.f32 %v125, %v128
    %s130 = sld [smem:[#allocation2 + $0x14]]
    %v131 = vstv %s130
    %v132 = vadd.f32 %v129, %v131
    %v133 = vtanh.pop %v132
    %s134 = sld [smem:[#allocation2 + $0x15]]
    %v135 = vstv %s134
    %v136 = vmul.f32 %v79, %v135
    %s137 = sld [smem:[#allocation2 + $0x1c]]
    %v138 = vstv %s137
    %v139 = vmul.f32 %v106, %v138
    %v140 = vadd.f32 %v136, %v139
    %s141 = sld [smem:[#allocation2 + $0x23]]
    %v142 = vstv %s141
    %v143 = vmul.f32 %v133, %v142
    %v144 = vadd.f32 %v140, %v143
    %s145 = sld [smem:[#allocation2 + $0x2a]]
    %v146 = vstv %s145
    %v147 = vadd.f32 %v144, %v146
    %v148 = vtanh.pop %v147
    %v149 = vmul.f32 %v148, 0.5
    %v150 = vadd.f32 %v149, 0.5
    %151 = vst [vmem:[#allocation7] sm:$0xff] %v150
    %s152 = sld [smem:[#allocation2 + $0x16]]
    %v153 = vstv %s152
    %v154 = vmul.f32 %v79, %v153
    %s155 = sld [smem:[#allocation2 + $0x1d]]
    %v156 = vstv %s155
    %v157 = vmul.f32 %v106, %v156
    %v158 = vadd.f32 %v154, %v157
    %s159 = sld [smem:[#allocation2 + $0x24]]
    %v160 = vstv %s159
    %v161 = vmul.f32 %v133, %v160
    %v162 = vadd.f32 %v158, %v161
    %s163 = sld [smem:[#allocation2 + $0x2b]]
    %v164 = vstv %s163
    %v165 = vadd.f32 %v162, %v164
    %v166 = vtanh.pop %v165
    %v167 = vmul.f32 %v166, 0.5
    %v168 = vadd.f32 %v167, 0.5
    %s169 = scalar_lea.vmem [#allocation7], %s38
    %170 = vst [vmem:[%s169] sm:$0xff] %v168
    %s171 = sld [smem:[#allocation2 + $0x17]]
    %v172 = vstv %s171
    %v173 = vmul.f32 %v79, %v172
    %s174 = sld [smem:[#allocation2 + $0x1e]]
    %v175 = vstv %s174
    %v176 = vmul.f32 %v106, %v175
    %v177 = vadd.f32 %v173, %v176
    %s178 = sld [smem:[#allocation2 + $0x25]]
    %v179 = vstv %s178
    %v180 = vmul.f32 %v133, %v179
    %v181 = vadd.f32 %v177, %v180
    %s182 = sld [smem:[#allocation2 + $0x2c]]
    %v183 = vstv %s182
    %v184 = vadd.f32 %v181, %v183
    %v185 = vtanh.pop %v184
    %v186 = vmul.f32 %v185, 0.5
    %v187 = vadd.f32 %v186, 0.5
    %s188 = scalar_lea.vmem [#allocation7], %s41
    %189 = vst [vmem:[%s188] sm:$0xff] %v187
    %s190 = sld [smem:[#allocation2 + $0x18]]
    %v191 = vstv %s190
    %v192 = vmul.f32 %v79, %v191
    %s193 = sld [smem:[#allocation2 + $0x1f]]
    %v194 = vstv %s193
    %v195 = vmul.f32 %v106, %v194
    %v196 = vadd.f32 %v192, %v195
    %s197 = sld [smem:[#allocation2 + $0x26]]
    %v198 = vstv %s197
    %v199 = vmul.f32 %v133, %v198
    %v200 = vadd.f32 %v196, %v199
    %s201 = sld [smem:[#allocation2 + $0x2d]]
    %v202 = vstv %s201
    %v203 = vadd.f32 %v200, %v202
    %v204 = vtanh.pop %v203
    %v205 = vmul.f32 %v204, 0.5
    %v206 = vadd.f32 %v205, 0.5
    %s207 = scalar_lea.vmem [#allocation7], %s44
    %208 = vst [vmem:[%s207] sm:$0xff] %v206
    %s209 = sld [smem:[#allocation2 + $0x19]]
    %v210 = vstv %s209
    %v211 = vmul.f32 %v79, %v210
    %s212 = sld [smem:[#allocation2 + $0x20]]
    %v213 = vstv %s212
    %v214 = vmul.f32 %v106, %v213
    %v215 = vadd.f32 %v211, %v214
    %s216 = sld [smem:[#allocation2 + $0x27]]
    %v217 = vstv %s216
    %v218 = vmul.f32 %v133, %v217
    %v219 = vadd.f32 %v215, %v218
    %s220 = sld [smem:[#allocation2 + $0x2e]]
    %v221 = vstv %s220
    %v222 = vadd.f32 %v219, %v221
    %v223 = vtanh.pop %v222
    %v224 = vmul.f32 %v223, 0.5
    %v225 = vadd.f32 %v224, 0.5
    %s226 = scalar_lea.vmem [#allocation7], %s47
    %227 = vst [vmem:[%s226] sm:$0xff] %v225
    %s228 = sld [smem:[#allocation2 + $0x1a]]
    %v229 = vstv %s228
    %v230 = vmul.f32 %v79, %v229
    %s231 = sld [smem:[#allocation2 + $0x21]]
    %v232 = vstv %s231
    %v233 = vmul.f32 %v106, %v232
    %v234 = vadd.f32 %v230, %v233
    %s235 = sld [smem:[#allocation2 + $0x28]]
    %v236 = vstv %s235
    %v237 = vmul.f32 %v133, %v236
    %v238 = vadd.f32 %v234, %v237
    %s239 = sld [smem:[#allocation2 + $0x2f]]
    %v240 = vstv %s239
    %v241 = vadd.f32 %v238, %v240
    %v242 = vtanh.pop %v241
    %v243 = vmul.f32 %v242, 0.5
    %v244 = vadd.f32 %v243, 0.5
    %s245 = scalar_lea.vmem [#allocation7], %s50
    %246 = vst [vmem:[%s245] sm:$0xff] %v244
    %s247 = sld [smem:[#allocation2 + $0x1b]]
    %v248 = vstv %s247
    %v249 = vmul.f32 %v79, %v248
    %s250 = sld [smem:[#allocation2 + $0x22]]
    %v251 = vstv %s250
    %v252 = vmul.f32 %v106, %v251
    %v253 = vadd.f32 %v249, %v252
    %s254 = sld [smem:[#allocation2 + $0x29]]
    %v255 = vstv %s254
    %v256 = vmul.f32 %v133, %v255
    %v257 = vadd.f32 %v253, %v256
    %s258 = sld [smem:[#allocation2 + $0x30]]
    %v259 = vstv %s258
    %v260 = vadd.f32 %v257, %v259
    %v261 = vtanh.pop %v260
    %v262 = vmul.f32 %v261, 0.5
    %v263 = vadd.f32 %v262, 0.5
    %s264 = sadd.s32 0, 48
    %s265 = scalar_lea.vmem [#allocation7], %s264
    %266 = vst [vmem:[%s265] sm:$0xff] %v263
    // Predicated region
    $region18: #{tpu_custom_call.1} parent=1 // pred_check
      _
    $region19: #{tpu_custom_call.1} parent=1 // pred_check_branch
      %268 = sbr.rel (0) target = $region21
    $region20: #{tpu_custom_call.1} parent=1 // pred_region
      %s270 = ssub.s32 896, 896
      %271 = vsyncadd [#allocation4], %s270
      %s272 = sshll.u32 [#allocation7], 4
      %s273 = int_to_ptr.vmem [resolvable:$true] %s272
      %278 = dma.vmem_to_hbm [thread:$0]  %s273, 896, %s2, [#allocation4], 128, 128, 8
    $region21: #{tpu_custom_call.1} parent=1 // pred_fallthru
      _
    // Predicated region
    $region22: #{tpu_custom_call.1} parent=1 // pred_check
      _
    $region23: #{tpu_custom_call.1} parent=1 // pred_check_branch
      %280 = sbr.rel (0) target = $region25
    $region24: #{tpu_custom_call.1} parent=1 // pred_region
      %281 = dma.done [#allocation4], 896
    $region25: #{tpu_custom_call.1} parent=1 // pred_fallthru
      _
    %282 = vsyncpa [#allocation3], 1
    %283 = vsyncpa [#allocation4], 1
    %284 = vsyncpa [#allocation5], 1

</llo_original>
